<compile_context>
chip_gen: v5e
topology: v5e:2x2
jax: 0.10.0
libtpu: 0.0.40
codegen_flags: <defaults>
</compile_context>

<pallas_src>
import functools

import jax
import jax.numpy as jnp
from jax import lax
from jax.experimental import pallas as pl
from jax.experimental.pallas import tpu as pltpu

INPUT_SIZE = 100
PADDED_INPUT = 128          # 100 -> 128 so the input matmul K dim is lane-aligned
HIDDEN = 64
OUT = 8


def gru_linear_kernel(x_ref, wi_ref, wh_ref, bgi_ref, bhn_ref, wl_ref, bl_ref,
                      out_ref, hs_ref, *, seq_len, batch):
    """x_ref: (S*B, 128); wi_ref: (128, 192); wh_ref: (64, 192);
    bgi_ref: (1, 192) f32 (b_ih with b_hr/b_hz folded in); bhn_ref: (1, 64) f32;
    wl_ref: (64, 8); bl_ref: (1, 8) f32; out_ref: (S*B, 8) f32;
    hs_ref: (S*B, 64) f32 VMEM scratch holding all hidden states."""
    H = HIDDEN

    # ---- hoisted input projection: one MXU call for the whole sequence ----
    gi_all = jnp.dot(x_ref[...], wi_ref[...],
                     preferred_element_type=jnp.float32) + bgi_ref[...]

    wh = wh_ref[...]                                         # (64, 192)
    # Hoist the broadcast out of the loop (JAX does not CSE broadcast_in_dim).
    bh_n = jnp.broadcast_to(bhn_ref[...], (batch, H))        # (B, 64) f32

    # ---- recurrence: fully unrolled (seq_len is a trace-time constant), ----
    # ---- h carried in registers, only the h @ W_hh matmul per step.      ----
    h = jnp.zeros((batch, H), jnp.float32)
    for t in range(seq_len):
        gi = gi_all[t * batch:(t + 1) * batch, :]            # (B, 192)
        gh = jnp.dot(h.astype(wh.dtype), wh,
                     preferred_element_type=jnp.float32)     # (B, 192)

        r = jax.nn.sigmoid(gi[:, 0:H] + gh[:, 0:H])
        z = jax.nn.sigmoid(gi[:, H:2 * H] + gh[:, H:2 * H])
        n = jnp.tanh(gi[:, 2 * H:3 * H] + r * (gh[:, 2 * H:3 * H] + bh_n))
        h = (1.0 - z) * n + z * h

        # Store-only (never re-read inside the recurrence) -> off the
        # serial critical path.
        hs_ref[t * batch:(t + 1) * batch, :] = h

    # ---- hoisted output projection + ReLU: one matmul, one store ----
    hs = hs_ref[...]                                         # (S*B, 64) f32
    y = jnp.dot(hs.astype(wl_ref.dtype), wl_ref[...],
                preferred_element_type=jnp.float32) + bl_ref[...]
    out_ref[...] = jnp.maximum(y, 0.0)


def summary_encoder_forward(x, params, *, matmul_dtype=jnp.float32):
    """x: (S, B, 100) float32. params: dict of PyTorch-shaped weights.

    matmul_dtype=jnp.bfloat16 narrows only the MXU inputs (f32 accumulation,
    f32 gate math and f32 recurrent state) -- recommended on v6e/v7x.
    """
    S, B, F_in = x.shape
    H = HIDDEN

    # Zero-pad the feature dim 100 -> 128 and flatten (S, B) -> S*B rows so the
    # hoisted input projection is a single lane-aligned matmul.
    x_pad = jnp.zeros((S, B, PADDED_INPUT), x.dtype).at[:, :, :F_in].set(x)
    x2 = x_pad.reshape(S * B, PADDED_INPUT).astype(matmul_dtype)

    wi = params["weight_ih_l0"].T                            # (100, 192)
    wi_pad = (jnp.zeros((PADDED_INPUT, 3 * H), jnp.float32)
              .at[:F_in, :].set(wi).astype(matmul_dtype))    # (128, 192)
    wh = params["weight_hh_l0"].T.astype(matmul_dtype)       # (64, 192)

    bi = params["bias_ih_l0"]                                # (192,)
    bh = params["bias_hh_l0"]                                # (192,)
    # Fold biases once: r/z gates get (b_i + b_h); n gate gets only b_in here,
    # b_hn stays separate because it is multiplied by r inside the cell.
    bgi = jnp.concatenate([bi[:H] + bh[:H],
                           bi[H:2 * H] + bh[H:2 * H],
                           bi[2 * H:]]).reshape(1, 3 * H).astype(jnp.float32)
    bhn = bh[2 * H:].reshape(1, H).astype(jnp.float32)

    wl = params["linear1_weight"].T.astype(matmul_dtype)     # (64, 8)
    bl = params["linear1_bias"].reshape(1, OUT).astype(jnp.float32)

    vmem = pl.BlockSpec(memory_space=pltpu.MemorySpace.VMEM)
    kernel = functools.partial(gru_linear_kernel, seq_len=S, batch=B)
    out2 = pl.pallas_call(
        kernel,
        out_shape=jax.ShapeDtypeStruct((S * B, OUT), jnp.float32),
        in_specs=[vmem] * 7,
        out_specs=vmem,
        scratch_shapes=[pltpu.VMEM((S * B, HIDDEN), jnp.float32)],
    )(x2, wi_pad, wh, bgi, bhn, wl, bl)
    return out2.reshape(S, B, OUT)


def summary_encoder_ref(x, params):
    """Pure-JAX reference matching PyTorch nn.GRU + Linear + ReLU semantics."""
    wi = params["weight_ih_l0"]
    wh = params["weight_hh_l0"]
    bi = params["bias_ih_l0"]
    bh = params["bias_hh_l0"]
    wl = params["linear1_weight"]
    bl = params["linear1_bias"]
    H = HIDDEN
    B = x.shape[1]

    def step(h, x_t):
        gi = x_t @ wi.T + bi
        gh = h @ wh.T + bh
        r = jax.nn.sigmoid(gi[:, :H] + gh[:, :H])
        z = jax.nn.sigmoid(gi[:, H:2 * H] + gh[:, H:2 * H])
        n = jnp.tanh(gi[:, 2 * H:] + r * gh[:, 2 * H:])
        h_new = (1.0 - z) * n + z * h
        return h_new, h_new

    h0 = jnp.zeros((B, H), jnp.float32)
    _, hs = lax.scan(step, h0, x)                            # (S, B, 64)
    return jnp.maximum(hs @ wl.T + bl, 0.0)


def init_params(key):
    """Deterministic init mirroring PyTorch shapes (uniform +/- 1/sqrt(H))."""
    k = jax.random.split(key, 6)
    s = 1.0 / jnp.sqrt(jnp.float32(HIDDEN))
    u = lambda kk, shape: jax.random.uniform(kk, shape, jnp.float32,
                                             minval=-s, maxval=s)
    return {
        "weight_ih_l0": u(k[0], (3 * HIDDEN, INPUT_SIZE)),
        "weight_hh_l0": u(k[1], (3 * HIDDEN, HIDDEN)),
        "bias_ih_l0":   u(k[2], (3 * HIDDEN,)),
        "bias_hh_l0":   u(k[3], (3 * HIDDEN,)),
        "linear1_weight": u(k[4], (OUT, HIDDEN)),
        "linear1_bias":   u(k[5], (OUT,)),
    }


if __name__ == "__main__":
    key = jax.random.PRNGKey(0)
    kx, kp = jax.random.split(key)

    SEQ, BATCH = 8, 2
    x = jax.random.normal(kx, (SEQ, BATCH, INPUT_SIZE), jnp.float32)
    params = init_params(kp)
    ref = summary_encoder_ref(x, params)

    # f32 MXU inputs: exact-semantics check.
    out_f32 = jax.block_until_ready(
        summary_encoder_forward(x, params, matmul_dtype=jnp.float32))
    assert out_f32.shape == (SEQ, BATCH, OUT)
    assert jnp.allclose(out_f32, ref, atol=1e-4, rtol=1e-4), "f32 mismatch"

    # bf16 MXU inputs (v6e/v7x fast path), f32 accumulation / state: looser tol.
    out_bf16 = jax.block_until_ready(
        summary_encoder_forward(x, params, matmul_dtype=jnp.bfloat16))
    assert jnp.allclose(out_bf16, ref, atol=5e-2, rtol=5e-2), "bf16 mismatch"

    print("KERNEL_OK")
</pallas_src>

<mosaic_0001>
module attributes {stable_mosaic.version = 11 : i64} {
  func.func @gru_linear_kernel(%arg0: memref<16x128xf32, #tpu.memory_space<vmem>>, %arg1: memref<128x192xf32, #tpu.memory_space<vmem>>, %arg2: memref<64x192xf32, #tpu.memory_space<vmem>>, %arg3: memref<1x192xf32, #tpu.memory_space<vmem>>, %arg4: memref<1x64xf32, #tpu.memory_space<vmem>>, %arg5: memref<64x8xf32, #tpu.memory_space<vmem>>, %arg6: memref<1x8xf32, #tpu.memory_space<vmem>>, %arg7: memref<16x8xf32, #tpu.memory_space<vmem>>, %arg8: memref<16x64xf32, #tpu.memory_space<vmem>>) attributes {dimension_semantics = [], scalar_prefetch = 0 : i64, scratch_operands = 1 : i64, tpu.core_type = #tpu.core_type<tc>} {
    %c0 = arith.constant 0 : index
    %c0_0 = arith.constant 0 : index
    %0 = vector.load %arg0[%c0, %c0_0] : memref<16x128xf32, #tpu.memory_space<vmem>>, vector<16x128xf32>
    %c0_1 = arith.constant 0 : index
    %c0_2 = arith.constant 0 : index
    %1 = vector.load %arg1[%c0_1, %c0_2] : memref<128x192xf32, #tpu.memory_space<vmem>>, vector<128x192xf32>
    %cst = arith.constant dense<0.000000e+00> : vector<16x192xf32>
    %2 = tpu.matmul %0, %1, %cst {dimension_numbers = #tpu.dot_dimension_numbers<[1], [0], [0], [1], [0, 0, 1, 1], [], []>} : vector<16x128xf32>, vector<128x192xf32>, vector<16x192xf32> -> vector<16x192xf32>
    %c0_3 = arith.constant 0 : index
    %c0_4 = arith.constant 0 : index
    %3 = vector.load %arg3[%c0_3, %c0_4] : memref<1x192xf32, #tpu.memory_space<vmem>>, vector<1x192xf32>
    %4 = vector.broadcast %3 : vector<1x192xf32> to vector<16x192xf32>
    %5 = arith.addf %2, %4 : vector<16x192xf32>
    %c0_5 = arith.constant 0 : index
    %c0_6 = arith.constant 0 : index
    %6 = vector.load %arg2[%c0_5, %c0_6] : memref<64x192xf32, #tpu.memory_space<vmem>>, vector<64x192xf32>
    %c0_7 = arith.constant 0 : index
    %c0_8 = arith.constant 0 : index
    %7 = vector.load %arg4[%c0_7, %c0_8] : memref<1x64xf32, #tpu.memory_space<vmem>>, vector<1x64xf32>
    %8 = vector.shape_cast %7 : vector<1x64xf32> to vector<1x64xf32>
    %9 = vector.broadcast %8 : vector<1x64xf32> to vector<2x64xf32>
    %cst_9 = arith.constant 0.000000e+00 : f32
    %10 = vector.broadcast %cst_9 : f32 to vector<2x64xf32>
    %11 = vector.extract_strided_slice %5 {offsets = [0, 0], sizes = [2, 192], strides = [1, 1]} : vector<16x192xf32> to vector<2x192xf32>
    %cst_10 = arith.constant dense<0.000000e+00> : vector<2x192xf32>
    %12 = tpu.matmul %10, %6, %cst_10 {dimension_numbers = #tpu.dot_dimension_numbers<[1], [0], [0], [1], [0, 0, 1, 1], [], []>} : vector<2x64xf32>, vector<64x192xf32>, vector<2x192xf32> -> vector<2x192xf32>
    %13 = vector.extract_strided_slice %11 {offsets = [0, 0], sizes = [2, 64], strides = [1, 1]} : vector<2x192xf32> to vector<2x64xf32>
    %14 = vector.extract_strided_slice %12 {offsets = [0, 0], sizes = [2, 64], strides = [1, 1]} : vector<2x192xf32> to vector<2x64xf32>
    %15 = arith.addf %13, %14 : vector<2x64xf32>
    %16 = arith.negf %15 : vector<2x64xf32>
    %17 = math.exp %16 : vector<2x64xf32>
    %cst_11 = arith.constant 1.000000e+00 : f32
    %18 = vector.broadcast %cst_11 : f32 to vector<2x64xf32>
    %19 = arith.addf %18, %17 : vector<2x64xf32>
    %20 = arith.divf %18, %19 : vector<2x64xf32>
    %21 = vector.extract_strided_slice %11 {offsets = [0, 64], sizes = [2, 64], strides = [1, 1]} : vector<2x192xf32> to vector<2x64xf32>
    %22 = vector.extract_strided_slice %12 {offsets = [0, 64], sizes = [2, 64], strides = [1, 1]} : vector<2x192xf32> to vector<2x64xf32>
    %23 = arith.addf %21, %22 : vector<2x64xf32>
    %24 = arith.negf %23 : vector<2x64xf32>
    %25 = math.exp %24 : vector<2x64xf32>
    %cst_12 = arith.constant 1.000000e+00 : f32
    %26 = vector.broadcast %cst_12 : f32 to vector<2x64xf32>
    %27 = arith.addf %26, %25 : vector<2x64xf32>
    %28 = arith.divf %26, %27 : vector<2x64xf32>
    %29 = vector.extract_strided_slice %11 {offsets = [0, 128], sizes = [2, 64], strides = [1, 1]} : vector<2x192xf32> to vector<2x64xf32>
    %30 = vector.extract_strided_slice %12 {offsets = [0, 128], sizes = [2, 64], strides = [1, 1]} : vector<2x192xf32> to vector<2x64xf32>
    %31 = arith.addf %30, %9 : vector<2x64xf32>
    %32 = arith.mulf %20, %31 : vector<2x64xf32>
    %33 = arith.addf %29, %32 : vector<2x64xf32>
    %34 = math.tanh %33 : vector<2x64xf32>
    %cst_13 = arith.constant 1.000000e+00 : f32
    %35 = vector.broadcast %cst_13 : f32 to vector<2x64xf32>
    %36 = arith.subf %35, %28 : vector<2x64xf32>
    %37 = arith.mulf %36, %34 : vector<2x64xf32>
    %38 = arith.mulf %28, %10 : vector<2x64xf32>
    %39 = arith.addf %37, %38 : vector<2x64xf32>
    %c0_14 = arith.constant 0 : index
    %c0_15 = arith.constant 0 : index
    %40 = vector.load %arg8[%c0_14, %c0_15] : memref<16x64xf32, #tpu.memory_space<vmem>>, vector<2x64xf32>
    tpu.vector_store %arg8[%c0_14, %c0_15], %39 {strides = array<i32>} : memref<16x64xf32, #tpu.memory_space<vmem>>, vector<2x64xf32>,
    %41 = vector.extract_strided_slice %5 {offsets = [2, 0], sizes = [2, 192], strides = [1, 1]} : vector<16x192xf32> to vector<2x192xf32>
    %cst_16 = arith.constant dense<0.000000e+00> : vector<2x192xf32>
    %42 = tpu.matmul %39, %6, %cst_16 {dimension_numbers = #tpu.dot_dimension_numbers<[1], [0], [0], [1], [0, 0, 1, 1], [], []>} : vector<2x64xf32>, vector<64x192xf32>, vector<2x192xf32> -> vector<2x192xf32>
    %43 = vector.extract_strided_slice %41 {offsets = [0, 0], sizes = [2, 64], strides = [1, 1]} : vector<2x192xf32> to vector<2x64xf32>
    %44 = vector.extract_strided_slice %42 {offsets = [0, 0], sizes = [2, 64], strides = [1, 1]} : vector<2x192xf32> to vector<2x64xf32>
    %45 = arith.addf %43, %44 : vector<2x64xf32>
    %46 = arith.negf %45 : vector<2x64xf32>
    %47 = math.exp %46 : vector<2x64xf32>
    %cst_17 = arith.constant 1.000000e+00 : f32
    %48 = vector.broadcast %cst_17 : f32 to vector<2x64xf32>
    %49 = arith.addf %48, %47 : vector<2x64xf32>
    %50 = arith.divf %48, %49 : vector<2x64xf32>
    %51 = vector.extract_strided_slice %41 {offsets = [0, 64], sizes = [2, 64], strides = [1, 1]} : vector<2x192xf32> to vector<2x64xf32>
    %52 = vector.extract_strided_slice %42 {offsets = [0, 64], sizes = [2, 64], strides = [1, 1]} : vector<2x192xf32> to vector<2x64xf32>
    %53 = arith.addf %51, %52 : vector<2x64xf32>
    %54 = arith.negf %53 : vector<2x64xf32>
    %55 = math.exp %54 : vector<2x64xf32>
    %cst_18 = arith.constant 1.000000e+00 : f32
    %56 = vector.broadcast %cst_18 : f32 to vector<2x64xf32>
    %57 = arith.addf %56, %55 : vector<2x64xf32>
    %58 = arith.divf %56, %57 : vector<2x64xf32>
    %59 = vector.extract_strided_slice %41 {offsets = [0, 128], sizes = [2, 64], strides = [1, 1]} : vector<2x192xf32> to vector<2x64xf32>
    %60 = vector.extract_strided_slice %42 {offsets = [0, 128], sizes = [2, 64], strides = [1, 1]} : vector<2x192xf32> to vector<2x64xf32>
    %61 = arith.addf %60, %9 : vector<2x64xf32>
    %62 = arith.mulf %50, %61 : vector<2x64xf32>
    %63 = arith.addf %59, %62 : vector<2x64xf32>
    %64 = math.tanh %63 : vector<2x64xf32>
    %cst_19 = arith.constant 1.000000e+00 : f32
    %65 = vector.broadcast %cst_19 : f32 to vector<2x64xf32>
    %66 = arith.subf %65, %58 : vector<2x64xf32>
    %67 = arith.mulf %66, %64 : vector<2x64xf32>
    %68 = arith.mulf %58, %39 : vector<2x64xf32>
    %69 = arith.addf %67, %68 : vector<2x64xf32>
    %c2 = arith.constant 2 : index
    %c0_20 = arith.constant 0 : index
    %70 = vector.load %arg8[%c2, %c0_20] : memref<16x64xf32, #tpu.memory_space<vmem>>, vector<2x64xf32>
    tpu.vector_store %arg8[%c2, %c0_20], %69 {strides = array<i32>} : memref<16x64xf32, #tpu.memory_space<vmem>>, vector<2x64xf32>,
    %71 = vector.extract_strided_slice %5 {offsets = [4, 0], sizes = [2, 192], strides = [1, 1]} : vector<16x192xf32> to vector<2x192xf32>
    %cst_21 = arith.constant dense<0.000000e+00> : vector<2x192xf32>
    %72 = tpu.matmul %69, %6, %cst_21 {dimension_numbers = #tpu.dot_dimension_numbers<[1], [0], [0], [1], [0, 0, 1, 1], [], []>} : vector<2x64xf32>, vector<64x192xf32>, vector<2x192xf32> -> vector<2x192xf32>
    %73 = vector.extract_strided_slice %71 {offsets = [0, 0], sizes = [2, 64], strides = [1, 1]} : vector<2x192xf32> to vector<2x64xf32>
    %74 = vector.extract_strided_slice %72 {offsets = [0, 0], sizes = [2, 64], strides = [1, 1]} : vector<2x192xf32> to vector<2x64xf32>
    %75 = arith.addf %73, %74 : vector<2x64xf32>
    %76 = arith.negf %75 : vector<2x64xf32>
    %77 = math.exp %76 : vector<2x64xf32>
    %cst_22 = arith.constant 1.000000e+00 : f32
    %78 = vector.broadcast %cst_22 : f32 to vector<2x64xf32>
    %79 = arith.addf %78, %77 : vector<2x64xf32>
    %80 = arith.divf %78, %79 : vector<2x64xf32>
    %81 = vector.extract_strided_slice %71 {offsets = [0, 64], sizes = [2, 64], strides = [1, 1]} : vector<2x192xf32> to vector<2x64xf32>
    %82 = vector.extract_strided_slice %72 {offsets = [0, 64], sizes = [2, 64], strides = [1, 1]} : vector<2x192xf32> to vector<2x64xf32>
    %83 = arith.addf %81, %82 : vector<2x64xf32>
    %84 = arith.negf %83 : vector<2x64xf32>
    %85 = math.exp %84 : vector<2x64xf32>
    %cst_23 = arith.constant 1.000000e+00 : f32
    %86 = vector.broadcast %cst_23 : f32 to vector<2x64xf32>
    %87 = arith.addf %86, %85 : vector<2x64xf32>
    %88 = arith.divf %86, %87 : vector<2x64xf32>
    %89 = vector.extract_strided_slice %71 {offsets = [0, 128], sizes = [2, 64], strides = [1, 1]} : vector<2x192xf32> to vector<2x64xf32>
    %90 = vector.extract_strided_slice %72 {offsets = [0, 128], sizes = [2, 64], strides = [1, 1]} : vector<2x192xf32> to vector<2x64xf32>
    %91 = arith.addf %90, %9 : vector<2x64xf32>
    %92 = arith.mulf %80, %91 : vector<2x64xf32>
    %93 = arith.addf %89, %92 : vector<2x64xf32>
    %94 = math.tanh %93 : vector<2x64xf32>
    %cst_24 = arith.constant 1.000000e+00 : f32
    %95 = vector.broadcast %cst_24 : f32 to vector<2x64xf32>
    %96 = arith.subf %95, %88 : vector<2x64xf32>
    %97 = arith.mulf %96, %94 : vector<2x64xf32>
    %98 = arith.mulf %88, %69 : vector<2x64xf32>
    %99 = arith.addf %97, %98 : vector<2x64xf32>
    %c4 = arith.constant 4 : index
    %c0_25 = arith.constant 0 : index
    %100 = vector.load %arg8[%c4, %c0_25] : memref<16x64xf32, #tpu.memory_space<vmem>>, vector<2x64xf32>
    tpu.vector_store %arg8[%c4, %c0_25], %99 {strides = array<i32>} : memref<16x64xf32, #tpu.memory_space<vmem>>, vector<2x64xf32>,
    %101 = vector.extract_strided_slice %5 {offsets = [6, 0], sizes = [2, 192], strides = [1, 1]} : vector<16x192xf32> to vector<2x192xf32>
    %cst_26 = arith.constant dense<0.000000e+00> : vector<2x192xf32>
    %102 = tpu.matmul %99, %6, %cst_26 {dimension_numbers = #tpu.dot_dimension_numbers<[1], [0], [0], [1], [0, 0, 1, 1], [], []>} : vector<2x64xf32>, vector<64x192xf32>, vector<2x192xf32> -> vector<2x192xf32>
    %103 = vector.extract_strided_slice %101 {offsets = [0, 0], sizes = [2, 64], strides = [1, 1]} : vector<2x192xf32> to vector<2x64xf32>
    %104 = vector.extract_strided_slice %102 {offsets = [0, 0], sizes = [2, 64], strides = [1, 1]} : vector<2x192xf32> to vector<2x64xf32>
    %105 = arith.addf %103, %104 : vector<2x64xf32>
    %106 = arith.negf %105 : vector<2x64xf32>
    %107 = math.exp %106 : vector<2x64xf32>
    %cst_27 = arith.constant 1.000000e+00 : f32
    %108 = vector.broadcast %cst_27 : f32 to vector<2x64xf32>
    %109 = arith.addf %108, %107 : vector<2x64xf32>
    %110 = arith.divf %108, %109 : vector<2x64xf32>
    %111 = vector.extract_strided_slice %101 {offsets = [0, 64], sizes = [2, 64], strides = [1, 1]} : vector<2x192xf32> to vector<2x64xf32>
    %112 = vector.extract_strided_slice %102 {offsets = [0, 64], sizes = [2, 64], strides = [1, 1]} : vector<2x192xf32> to vector<2x64xf32>
    %113 = arith.addf %111, %112 : vector<2x64xf32>
    %114 = arith.negf %113 : vector<2x64xf32>
    %115 = math.exp %114 : vector<2x64xf32>
    %cst_28 = arith.constant 1.000000e+00 : f32
    %116 = vector.broadcast %cst_28 : f32 to vector<2x64xf32>
    %117 = arith.addf %116, %115 : vector<2x64xf32>
    %118 = arith.divf %116, %117 : vector<2x64xf32>
    %119 = vector.extract_strided_slice %101 {offsets = [0, 128], sizes = [2, 64], strides = [1, 1]} : vector<2x192xf32> to vector<2x64xf32>
    %120 = vector.extract_strided_slice %102 {offsets = [0, 128], sizes = [2, 64], strides = [1, 1]} : vector<2x192xf32> to vector<2x64xf32>
    %121 = arith.addf %120, %9 : vector<2x64xf32>
    %122 = arith.mulf %110, %121 : vector<2x64xf32>
    %123 = arith.addf %119, %122 : vector<2x64xf32>
    %124 = math.tanh %123 : vector<2x64xf32>
    %cst_29 = arith.constant 1.000000e+00 : f32
    %125 = vector.broadcast %cst_29 : f32 to vector<2x64xf32>
    %126 = arith.subf %125, %118 : vector<2x64xf32>
    %127 = arith.mulf %126, %124 : vector<2x64xf32>
    %128 = arith.mulf %118, %99 : vector<2x64xf32>
    %129 = arith.addf %127, %128 : vector<2x64xf32>
    %c6 = arith.constant 6 : index
    %c0_30 = arith.constant 0 : index
    %130 = vector.load %arg8[%c6, %c0_30] : memref<16x64xf32, #tpu.memory_space<vmem>>, vector<2x64xf32>
    tpu.vector_store %arg8[%c6, %c0_30], %129 {strides = array<i32>} : memref<16x64xf32, #tpu.memory_space<vmem>>, vector<2x64xf32>,
    %131 = vector.extract_strided_slice %5 {offsets = [8, 0], sizes = [2, 192], strides = [1, 1]} : vector<16x192xf32> to vector<2x192xf32>
    %cst_31 = arith.constant dense<0.000000e+00> : vector<2x192xf32>
    %132 = tpu.matmul %129, %6, %cst_31 {dimension_numbers = #tpu.dot_dimension_numbers<[1], [0], [0], [1], [0, 0, 1, 1], [], []>} : vector<2x64xf32>, vector<64x192xf32>, vector<2x192xf32> -> vector<2x192xf32>
    %133 = vector.extract_strided_slice %131 {offsets = [0, 0], sizes = [2, 64], strides = [1, 1]} : vector<2x192xf32> to vector<2x64xf32>
    %134 = vector.extract_strided_slice %132 {offsets = [0, 0], sizes = [2, 64], strides = [1, 1]} : vector<2x192xf32> to vector<2x64xf32>
    %135 = arith.addf %133, %134 : vector<2x64xf32>
    %136 = arith.negf %135 : vector<2x64xf32>
    %137 = math.exp %136 : vector<2x64xf32>
    %cst_32 = arith.constant 1.000000e+00 : f32
    %138 = vector.broadcast %cst_32 : f32 to vector<2x64xf32>
    %139 = arith.addf %138, %137 : vector<2x64xf32>
    %140 = arith.divf %138, %139 : vector<2x64xf32>
    %141 = vector.extract_strided_slice %131 {offsets = [0, 64], sizes = [2, 64], strides = [1, 1]} : vector<2x192xf32> to vector<2x64xf32>
    %142 = vector.extract_strided_slice %132 {offsets = [0, 64], sizes = [2, 64], strides = [1, 1]} : vector<2x192xf32> to vector<2x64xf32>
    %143 = arith.addf %141, %142 : vector<2x64xf32>
    %144 = arith.negf %143 : vector<2x64xf32>
    %145 = math.exp %144 : vector<2x64xf32>
    %cst_33 = arith.constant 1.000000e+00 : f32
    %146 = vector.broadcast %cst_33 : f32 to vector<2x64xf32>
    %147 = arith.addf %146, %145 : vector<2x64xf32>
    %148 = arith.divf %146, %147 : vector<2x64xf32>
    %149 = vector.extract_strided_slice %131 {offsets = [0, 128], sizes = [2, 64], strides = [1, 1]} : vector<2x192xf32> to vector<2x64xf32>
    %150 = vector.extract_strided_slice %132 {offsets = [0, 128], sizes = [2, 64], strides = [1, 1]} : vector<2x192xf32> to vector<2x64xf32>
    %151 = arith.addf %150, %9 : vector<2x64xf32>
    %152 = arith.mulf %140, %151 : vector<2x64xf32>
    %153 = arith.addf %149, %152 : vector<2x64xf32>
    %154 = math.tanh %153 : vector<2x64xf32>
    %cst_34 = arith.constant 1.000000e+00 : f32
    %155 = vector.broadcast %cst_34 : f32 to vector<2x64xf32>
    %156 = arith.subf %155, %148 : vector<2x64xf32>
    %157 = arith.mulf %156, %154 : vector<2x64xf32>
    %158 = arith.mulf %148, %129 : vector<2x64xf32>
    %159 = arith.addf %157, %158 : vector<2x64xf32>
    %c8 = arith.constant 8 : index
    %c0_35 = arith.constant 0 : index
    %160 = vector.load %arg8[%c8, %c0_35] : memref<16x64xf32, #tpu.memory_space<vmem>>, vector<2x64xf32>
    tpu.vector_store %arg8[%c8, %c0_35], %159 {strides = array<i32>} : memref<16x64xf32, #tpu.memory_space<vmem>>, vector<2x64xf32>,
    %161 = vector.extract_strided_slice %5 {offsets = [10, 0], sizes = [2, 192], strides = [1, 1]} : vector<16x192xf32> to vector<2x192xf32>
    %cst_36 = arith.constant dense<0.000000e+00> : vector<2x192xf32>
    %162 = tpu.matmul %159, %6, %cst_36 {dimension_numbers = #tpu.dot_dimension_numbers<[1], [0], [0], [1], [0, 0, 1, 1], [], []>} : vector<2x64xf32>, vector<64x192xf32>, vector<2x192xf32> -> vector<2x192xf32>
    %163 = vector.extract_strided_slice %161 {offsets = [0, 0], sizes = [2, 64], strides = [1, 1]} : vector<2x192xf32> to vector<2x64xf32>
    %164 = vector.extract_strided_slice %162 {offsets = [0, 0], sizes = [2, 64], strides = [1, 1]} : vector<2x192xf32> to vector<2x64xf32>
    %165 = arith.addf %163, %164 : vector<2x64xf32>
    %166 = arith.negf %165 : vector<2x64xf32>
    %167 = math.exp %166 : vector<2x64xf32>
    %cst_37 = arith.constant 1.000000e+00 : f32
    %168 = vector.broadcast %cst_37 : f32 to vector<2x64xf32>
    %169 = arith.addf %168, %167 : vector<2x64xf32>
    %170 = arith.divf %168, %169 : vector<2x64xf32>
    %171 = vector.extract_strided_slice %161 {offsets = [0, 64], sizes = [2, 64], strides = [1, 1]} : vector<2x192xf32> to vector<2x64xf32>
    %172 = vector.extract_strided_slice %162 {offsets = [0, 64], sizes = [2, 64], strides = [1, 1]} : vector<2x192xf32> to vector<2x64xf32>
    %173 = arith.addf %171, %172 : vector<2x64xf32>
    %174 = arith.negf %173 : vector<2x64xf32>
    %175 = math.exp %174 : vector<2x64xf32>
    %cst_38 = arith.constant 1.000000e+00 : f32
    %176 = vector.broadcast %cst_38 : f32 to vector<2x64xf32>
    %177 = arith.addf %176, %175 : vector<2x64xf32>
    %178 = arith.divf %176, %177 : vector<2x64xf32>
    %179 = vector.extract_strided_slice %161 {offsets = [0, 128], sizes = [2, 64], strides = [1, 1]} : vector<2x192xf32> to vector<2x64xf32>
    %180 = vector.extract_strided_slice %162 {offsets = [0, 128], sizes = [2, 64], strides = [1, 1]} : vector<2x192xf32> to vector<2x64xf32>
    %181 = arith.addf %180, %9 : vector<2x64xf32>
    %182 = arith.mulf %170, %181 : vector<2x64xf32>
    %183 = arith.addf %179, %182 : vector<2x64xf32>
    %184 = math.tanh %183 : vector<2x64xf32>
    %cst_39 = arith.constant 1.000000e+00 : f32
    %185 = vector.broadcast %cst_39 : f32 to vector<2x64xf32>
    %186 = arith.subf %185, %178 : vector<2x64xf32>
    %187 = arith.mulf %186, %184 : vector<2x64xf32>
    %188 = arith.mulf %178, %159 : vector<2x64xf32>
    %189 = arith.addf %187, %188 : vector<2x64xf32>
    %c10 = arith.constant 10 : index
    %c0_40 = arith.constant 0 : index
    %190 = vector.load %arg8[%c10, %c0_40] : memref<16x64xf32, #tpu.memory_space<vmem>>, vector<2x64xf32>
    tpu.vector_store %arg8[%c10, %c0_40], %189 {strides = array<i32>} : memref<16x64xf32, #tpu.memory_space<vmem>>, vector<2x64xf32>,
    %191 = vector.extract_strided_slice %5 {offsets = [12, 0], sizes = [2, 192], strides = [1, 1]} : vector<16x192xf32> to vector<2x192xf32>
    %cst_41 = arith.constant dense<0.000000e+00> : vector<2x192xf32>
    %192 = tpu.matmul %189, %6, %cst_41 {dimension_numbers = #tpu.dot_dimension_numbers<[1], [0], [0], [1], [0, 0, 1, 1], [], []>} : vector<2x64xf32>, vector<64x192xf32>, vector<2x192xf32> -> vector<2x192xf32>
    %193 = vector.extract_strided_slice %191 {offsets = [0, 0], sizes = [2, 64], strides = [1, 1]} : vector<2x192xf32> to vector<2x64xf32>
    %194 = vector.extract_strided_slice %192 {offsets = [0, 0], sizes = [2, 64], strides = [1, 1]} : vector<2x192xf32> to vector<2x64xf32>
    %195 = arith.addf %193, %194 : vector<2x64xf32>
    %196 = arith.negf %195 : vector<2x64xf32>
    %197 = math.exp %196 : vector<2x64xf32>
    %cst_42 = arith.constant 1.000000e+00 : f32
    %198 = vector.broadcast %cst_42 : f32 to vector<2x64xf32>
    %199 = arith.addf %198, %197 : vector<2x64xf32>
    %200 = arith.divf %198, %199 : vector<2x64xf32>
    %201 = vector.extract_strided_slice %191 {offsets = [0, 64], sizes = [2, 64], strides = [1, 1]} : vector<2x192xf32> to vector<2x64xf32>
    %202 = vector.extract_strided_slice %192 {offsets = [0, 64], sizes = [2, 64], strides = [1, 1]} : vector<2x192xf32> to vector<2x64xf32>
    %203 = arith.addf %201, %202 : vector<2x64xf32>
    %204 = arith.negf %203 : vector<2x64xf32>
    %205 = math.exp %204 : vector<2x64xf32>
    %cst_43 = arith.constant 1.000000e+00 : f32
    %206 = vector.broadcast %cst_43 : f32 to vector<2x64xf32>
    %207 = arith.addf %206, %205 : vector<2x64xf32>
    %208 = arith.divf %206, %207 : vector<2x64xf32>
    %209 = vector.extract_strided_slice %191 {offsets = [0, 128], sizes = [2, 64], strides = [1, 1]} : vector<2x192xf32> to vector<2x64xf32>
    %210 = vector.extract_strided_slice %192 {offsets = [0, 128], sizes = [2, 64], strides = [1, 1]} : vector<2x192xf32> to vector<2x64xf32>
    %211 = arith.addf %210, %9 : vector<2x64xf32>
    %212 = arith.mulf %200, %211 : vector<2x64xf32>
    %213 = arith.addf %209, %212 : vector<2x64xf32>
    %214 = math.tanh %213 : vector<2x64xf32>
    %cst_44 = arith.constant 1.000000e+00 : f32
    %215 = vector.broadcast %cst_44 : f32 to vector<2x64xf32>
    %216 = arith.subf %215, %208 : vector<2x64xf32>
    %217 = arith.mulf %216, %214 : vector<2x64xf32>
    %218 = arith.mulf %208, %189 : vector<2x64xf32>
    %219 = arith.addf %217, %218 : vector<2x64xf32>
    %c12 = arith.constant 12 : index
    %c0_45 = arith.constant 0 : index
    %220 = vector.load %arg8[%c12, %c0_45] : memref<16x64xf32, #tpu.memory_space<vmem>>, vector<2x64xf32>
    tpu.vector_store %arg8[%c12, %c0_45], %219 {strides = array<i32>} : memref<16x64xf32, #tpu.memory_space<vmem>>, vector<2x64xf32>,
    %221 = vector.extract_strided_slice %5 {offsets = [14, 0], sizes = [2, 192], strides = [1, 1]} : vector<16x192xf32> to vector<2x192xf32>
    %cst_46 = arith.constant dense<0.000000e+00> : vector<2x192xf32>
    %222 = tpu.matmul %219, %6, %cst_46 {dimension_numbers = #tpu.dot_dimension_numbers<[1], [0], [0], [1], [0, 0, 1, 1], [], []>} : vector<2x64xf32>, vector<64x192xf32>, vector<2x192xf32> -> vector<2x192xf32>
    %223 = vector.extract_strided_slice %221 {offsets = [0, 0], sizes = [2, 64], strides = [1, 1]} : vector<2x192xf32> to vector<2x64xf32>
    %224 = vector.extract_strided_slice %222 {offsets = [0, 0], sizes = [2, 64], strides = [1, 1]} : vector<2x192xf32> to vector<2x64xf32>
    %225 = arith.addf %223, %224 : vector<2x64xf32>
    %226 = arith.negf %225 : vector<2x64xf32>
    %227 = math.exp %226 : vector<2x64xf32>
    %cst_47 = arith.constant 1.000000e+00 : f32
    %228 = vector.broadcast %cst_47 : f32 to vector<2x64xf32>
    %229 = arith.addf %228, %227 : vector<2x64xf32>
    %230 = arith.divf %228, %229 : vector<2x64xf32>
    %231 = vector.extract_strided_slice %221 {offsets = [0, 64], sizes = [2, 64], strides = [1, 1]} : vector<2x192xf32> to vector<2x64xf32>
    %232 = vector.extract_strided_slice %222 {offsets = [0, 64], sizes = [2, 64], strides = [1, 1]} : vector<2x192xf32> to vector<2x64xf32>
    %233 = arith.addf %231, %232 : vector<2x64xf32>
    %234 = arith.negf %233 : vector<2x64xf32>
    %235 = math.exp %234 : vector<2x64xf32>
    %cst_48 = arith.constant 1.000000e+00 : f32
    %236 = vector.broadcast %cst_48 : f32 to vector<2x64xf32>
    %237 = arith.addf %236, %235 : vector<2x64xf32>
    %238 = arith.divf %236, %237 : vector<2x64xf32>
    %239 = vector.extract_strided_slice %221 {offsets = [0, 128], sizes = [2, 64], strides = [1, 1]} : vector<2x192xf32> to vector<2x64xf32>
    %240 = vector.extract_strided_slice %222 {offsets = [0, 128], sizes = [2, 64], strides = [1, 1]} : vector<2x192xf32> to vector<2x64xf32>
    %241 = arith.addf %240, %9 : vector<2x64xf32>
    %242 = arith.mulf %230, %241 : vector<2x64xf32>
    %243 = arith.addf %239, %242 : vector<2x64xf32>
    %244 = math.tanh %243 : vector<2x64xf32>
    %cst_49 = arith.constant 1.000000e+00 : f32
    %245 = vector.broadcast %cst_49 : f32 to vector<2x64xf32>
    %246 = arith.subf %245, %238 : vector<2x64xf32>
    %247 = arith.mulf %246, %244 : vector<2x64xf32>
    %248 = arith.mulf %238, %219 : vector<2x64xf32>
    %249 = arith.addf %247, %248 : vector<2x64xf32>
    %c14 = arith.constant 14 : index
    %c0_50 = arith.constant 0 : index
    %250 = vector.load %arg8[%c14, %c0_50] : memref<16x64xf32, #tpu.memory_space<vmem>>, vector<2x64xf32>
    tpu.vector_store %arg8[%c14, %c0_50], %249 {strides = array<i32>} : memref<16x64xf32, #tpu.memory_space<vmem>>, vector<2x64xf32>,
    %c0_51 = arith.constant 0 : index
    %c0_52 = arith.constant 0 : index
    %251 = vector.load %arg8[%c0_51, %c0_52] : memref<16x64xf32, #tpu.memory_space<vmem>>, vector<16x64xf32>
    %c0_53 = arith.constant 0 : index
    %c0_54 = arith.constant 0 : index
    %252 = vector.load %arg5[%c0_53, %c0_54] : memref<64x8xf32, #tpu.memory_space<vmem>>, vector<64x8xf32>
    %cst_55 = arith.constant dense<0.000000e+00> : vector<16x8xf32>
    %253 = tpu.matmul %251, %252, %cst_55 {dimension_numbers = #tpu.dot_dimension_numbers<[1], [0], [0], [1], [0, 0, 1, 1], [], []>} : vector<16x64xf32>, vector<64x8xf32>, vector<16x8xf32> -> vector<16x8xf32>
    %c0_56 = arith.constant 0 : index
    %c0_57 = arith.constant 0 : index
    %254 = vector.load %arg6[%c0_56, %c0_57] : memref<1x8xf32, #tpu.memory_space<vmem>>, vector<1x8xf32>
    %255 = vector.broadcast %254 : vector<1x8xf32> to vector<16x8xf32>
    %256 = arith.addf %253, %255 : vector<16x8xf32>
    %cst_58 = arith.constant 0.000000e+00 : f32
    %257 = vector.broadcast %cst_58 : f32 to vector<16x8xf32>
    %258 = arith.maximumf %256, %257 : vector<16x8xf32>
    %c0_59 = arith.constant 0 : index
    %c0_60 = arith.constant 0 : index
    %259 = vector.load %arg7[%c0_59, %c0_60] : memref<16x8xf32, #tpu.memory_space<vmem>>, vector<16x8xf32>
    tpu.vector_store %arg7[%c0_59, %c0_60], %258 {strides = array<i32>} : memref<16x8xf32, #tpu.memory_space<vmem>>, vector<16x8xf32>,
    return
  }
}

</mosaic_0001>

<llo_original>
// kernel: tpu_custom_call.1
$region0: #{tpu_custom_call.1}
  #allocation0 [shape = 'u32[]', space=smem, size = 0x4, offset = 0x4, fixed_abs, tag = 'smem constant byte address 0x4 - core index']
  #allocation1 [shape = 'u32[72,128]{1,0:T(1,128)}', space=vmem, size = 0x9000, scoped, tag = 'internal scratch']
  #allocation2 [shape = 'f32[16,64]{1,0:T(8,128)}', space=vmem, size = 0x2000, scoped, tag = 'scratch operand']
  %s0 = inlined_call_operand.vmem [shape: f32[16,128], index: 0, kind: input, shape index: {}]
  %s1 = inlined_call_operand.vmem [shape: f32[128,192], index: 1, kind: input, shape index: {}]
  %s2 = inlined_call_operand.vmem [shape: f32[64,192], index: 2, kind: input, shape index: {}]
  %s3 = inlined_call_operand.vmem [shape: f32[1,192], index: 3, kind: input, shape index: {}]
  %s4 = inlined_call_operand.vmem [shape: f32[1,64], index: 4, kind: input, shape index: {}]
  %s5 = inlined_call_operand.vmem [shape: f32[64,8], index: 5, kind: input, shape index: {}]
  %s6 = inlined_call_operand.vmem [shape: f32[1,8], index: 6, kind: input, shape index: {}]
  %s7 = inlined_call_operand.vmem [shape: f32[16,8], index: 7, kind: output, shape index: {}]
  %s8 = sld [smem:[#allocation0]]
  $region38: #{tpu_custom_call.1} parent=0
    _
  %s10 = ssub.s32 1, %s8
  %s11 = scalar_select 0, %s10, %s8
  // Predicated region
  $region2: #{tpu_custom_call.1} parent=0 // pred_check
    _
  $region3: #{tpu_custom_call.1} parent=0 // pred_check_branch
    %13 = sbr.rel (0) target = $region5
  $region4: #{tpu_custom_call.1} parent=0 // pred_region
    _
  $region5: #{tpu_custom_call.1} parent=0 // pred_fallthru
    _
  // Predicated region
  $region6: #{tpu_custom_call.1} parent=0 // pred_check
    _
  $region7: #{tpu_custom_call.1} parent=0 // pred_check_branch
    %15 = sbr.rel (0) target = $region9
  $region8: #{tpu_custom_call.1} parent=0 // pred_region
    _
  $region9: #{tpu_custom_call.1} parent=0 // pred_fallthru
    _
  // Predicated region
  $region10: #{tpu_custom_call.1} parent=0 // pred_check
    _
  $region11: #{tpu_custom_call.1} parent=0 // pred_check_branch
    %17 = sbr.rel (0) target = $region13
  $region12: #{tpu_custom_call.1} parent=0 // pred_region
    _
  $region13: #{tpu_custom_call.1} parent=0 // pred_fallthru
    _
  // Predicated region
  $region14: #{tpu_custom_call.1} parent=0 // pred_check
    _
  $region15: #{tpu_custom_call.1} parent=0 // pred_check_branch
    %19 = sbr.rel (0) target = $region17
  $region16: #{tpu_custom_call.1} parent=0 // pred_region
    _
  $region17: #{tpu_custom_call.1} parent=0 // pred_fallthru
    _
  // Predicated region
  $region18: #{tpu_custom_call.1} parent=0 // pred_check
    _
  $region19: #{tpu_custom_call.1} parent=0 // pred_check_branch
    %21 = sbr.rel (0) target = $region21
  $region20: #{tpu_custom_call.1} parent=0 // pred_region
    _
  $region21: #{tpu_custom_call.1} parent=0 // pred_fallthru
    _
  // Predicated region
  $region22: #{tpu_custom_call.1} parent=0 // pred_check
    _
  $region23: #{tpu_custom_call.1} parent=0 // pred_check_branch
    %23 = sbr.rel (0) target = $region25
  $region24: #{tpu_custom_call.1} parent=0 // pred_region
    _
  $region25: #{tpu_custom_call.1} parent=0 // pred_fallthru
    _
  // Predicated region
  $region26: #{tpu_custom_call.1} parent=0 // pred_check
    _
  $region27: #{tpu_custom_call.1} parent=0 // pred_check_branch
    %25 = sbr.rel (0) target = $region29
  $region28: #{tpu_custom_call.1} parent=0 // pred_region
    _
  $region29: #{tpu_custom_call.1} parent=0 // pred_fallthru
    _
  %v26 = vld [vmem:[%s0] sm:$0xff]
  %v27 = vld [vmem:[%s0 + $0x8] sm:$0xff]
  %v28 = vld [vmem:[%s1] sm:$0xff]
  %v29 = vld [vmem:[%s1 + $0x8] sm:$0xff]
  %v30 = vld [vmem:[%s1 + $0x10] sm:$0xff]
  %v31 = vld [vmem:[%s1 + $0x18] sm:$0xff]
  %v32 = vld [vmem:[%s1 + $0x20] sm:$0xff]
  %v33 = vld [vmem:[%s1 + $0x28] sm:$0xff]
  %v34 = vld [vmem:[%s1 + $0x30] sm:$0xff]
  %v35 = vld [vmem:[%s1 + $0x38] sm:$0xff]
  %v36 = vld [vmem:[%s1 + $0x40] sm:$0xff]
  %v37 = vld [vmem:[%s1 + $0x48] sm:$0xff]
  %v38 = vld [vmem:[%s1 + $0x50] sm:$0xff]
  %v39 = vld [vmem:[%s1 + $0x58] sm:$0xff]
  %v40 = vld [vmem:[%s1 + $0x60] sm:$0xff]
  %v41 = vld [vmem:[%s1 + $0x68] sm:$0xff]
  %v42 = vld [vmem:[%s1 + $0x70] sm:$0xff]
  %v43 = vld [vmem:[%s1 + $0x78] sm:$0xff]
  %v44 = vld [vmem:[%s1 + $0x80] sm:$0xff]
  %v45 = vld [vmem:[%s1 + $0x88] sm:$0xff]
  %v46 = vld [vmem:[%s1 + $0x90] sm:$0xff]
  %v47 = vld [vmem:[%s1 + $0x98] sm:$0xff]
  %v48 = vld [vmem:[%s1 + $0xa0] sm:$0xff]
  %v49 = vld [vmem:[%s1 + $0xa8] sm:$0xff]
  %v50 = vld [vmem:[%s1 + $0xb0] sm:$0xff]
  %v51 = vld [vmem:[%s1 + $0xb8] sm:$0xff]
  %v52 = vld [vmem:[%s1 + $0xc0] sm:$0xff]
  %v53 = vld [vmem:[%s1 + $0xc8] sm:$0xff]
  %v54 = vld [vmem:[%s1 + $0xd0] sm:$0xff]
  %v55 = vld [vmem:[%s1 + $0xd8] sm:$0xff]
  %v56 = vld [vmem:[%s1 + $0xe0] sm:$0xff]
  %v57 = vld [vmem:[%s1 + $0xe8] sm:$0xff]
  %v58 = vld [vmem:[%s1 + $0xf0] sm:$0xff]
  %v59 = vld [vmem:[%s1 + $0xf8] sm:$0xff]
  %v60 = vld [vmem:[%s3] sm:$0x3]
  %v62 = vperm.slane %v60, 0
  %v63 = vperm.slane %v60, 1
  %66 = vmatpush.msra.mxu0 %v58
  %67 = vmatpush.msra.mxu0 %v56
  %68 = vmatpush.msra.mxu0 %v54
  %69 = vmatpush.msra.mxu0 %v52
  %70 = vmatpush.msra.mxu0 %v50
  %71 = vmatpush.msra.mxu0 %v48
  %72 = vmatpush.msra.mxu0 %v46
  %73 = vmatpush.msra.mxu0 %v44
  %74 = vmatpush.msra.mxu0 %v42
  %75 = vmatpush.msra.mxu0 %v40
  %76 = vmatpush.msra.mxu0 %v38
  %77 = vmatpush.msra.mxu0 %v36
  %78 = vmatpush.msra.mxu0 %v34
  %79 = vmatpush.msra.mxu0 %v32
  %80 = vmatpush.msra.mxu0 %v30
  %81 = vmatpush.msra.mxu0 %v28
  %82 = vmatmul.f32.gmra.mxu0 %v26
  %v83 = vpop.f32.mrf.mxu0
  %v84 = vadd.f32 %v62, %v83
  %85 = vmatmul.f32.gmra.mxu0 %v27
  %v86 = vpop.f32.mrf.mxu0
  %v87 = vadd.f32 %v62, %v86
  %88 = vdwg.mxu0
  %89 = vmatpush.msra.mxu0 %v59
  %90 = vmatpush.msra.mxu0 %v57
  %91 = vmatpush.msra.mxu0 %v55
  %92 = vmatpush.msra.mxu0 %v53
  %93 = vmatpush.msra.mxu0 %v51
  %94 = vmatpush.msra.mxu0 %v49
  %95 = vmatpush.msra.mxu0 %v47
  %96 = vmatpush.msra.mxu0 %v45
  %97 = vmatpush.msra.mxu0 %v43
  %98 = vmatpush.msra.mxu0 %v41
  %99 = vmatpush.msra.mxu0 %v39
  %100 = vmatpush.msra.mxu0 %v37
  %101 = vmatpush.msra.mxu0 %v35
  %102 = vmatpush.msra.mxu0 %v33
  %103 = vmatpush.msra.mxu0 %v31
  %104 = vmatpush.msra.mxu0 %v29
  %105 = vmatmul.f32.gmra.mxu0 %v26
  %v106 = vpop.f32.mrf.mxu0
  %v107 = vadd.f32 %v63, %v106
  %108 = vmatmul.f32.gmra.mxu0 %v27
  %v109 = vpop.f32.mrf.mxu0
  %v110 = vadd.f32 %v63, %v109
  %111 = vdwg.mxu0
  %v112 = vld [vmem:[%s2] sm:$0xff]
  %v113 = vld [vmem:[%s2 + $0x8] sm:$0xff]
  %v114 = vld [vmem:[%s2 + $0x10] sm:$0xff]
  %v115 = vld [vmem:[%s2 + $0x18] sm:$0xff]
  %v116 = vld [vmem:[%s2 + $0x20] sm:$0xff]
  %v117 = vld [vmem:[%s2 + $0x28] sm:$0xff]
  %v118 = vld [vmem:[%s2 + $0x30] sm:$0xff]
  %v119 = vld [vmem:[%s2 + $0x38] sm:$0xff]
  %v120 = vld [vmem:[%s2 + $0x40] sm:$0xff]
  %v121 = vld [vmem:[%s2 + $0x48] sm:$0xff]
  %v122 = vld [vmem:[%s2 + $0x50] sm:$0xff]
  %v123 = vld [vmem:[%s2 + $0x58] sm:$0xff]
  %v124 = vld [vmem:[%s2 + $0x60] sm:$0xff]
  %v125 = vld [vmem:[%s2 + $0x68] sm:$0xff]
  %v126 = vld [vmem:[%s2 + $0x70] sm:$0xff]
  %v127 = vld [vmem:[%s2 + $0x78] sm:$0xff]
  %v128 = vld [vmem:[%s4] sm:$0x1]
  %v130 = vperm.slane %v128, 0
  %vm132 = vcmask 523264
  %v134 = vsel %vm132, 0.0, 0
  %136 = vmatpush.msra.mxu0 0.0
  %137 = vmatpush.msra.mxu0 0.0
  %138 = vmatpush.msra.mxu0 0.0
  %139 = vmatpush.msra.mxu0 0.0
  %140 = vmatpush.msra.mxu0 0.0
  %141 = vmatpush.msra.mxu0 0.0
  %142 = vmatpush.msra.mxu0 0.0
  %143 = vmatpush.msra.mxu0 0.0
  %144 = vmatpush.msra.mxu0 %v126
  %145 = vmatpush.msra.mxu0 %v124
  %146 = vmatpush.msra.mxu0 %v122
  %147 = vmatpush.msra.mxu0 %v120
  %148 = vmatpush.msra.mxu0 %v118
  %149 = vmatpush.msra.mxu0 %v116
  %150 = vmatpush.msra.mxu0 %v114
  %151 = vmatpush.msra.mxu0 %v112
  %152 = vmatmul.f32.gmra.mxu0 %v134
  %v153 = vpop.f32.mrf.mxu0
  %v154 = vadd.f32 0.0, %v153
  %155 = vdwg.mxu0
  %156 = vmatpush.msra.mxu0 0.0
  %157 = vmatpush.msra.mxu0 0.0
  %158 = vmatpush.msra.mxu0 0.0
  %159 = vmatpush.msra.mxu0 0.0
  %160 = vmatpush.msra.mxu0 0.0
  %161 = vmatpush.msra.mxu0 0.0
  %162 = vmatpush.msra.mxu0 0.0
  %163 = vmatpush.msra.mxu0 0.0
  %164 = vmatpush.msra.mxu0 %v127
  %165 = vmatpush.msra.mxu0 %v125
  %166 = vmatpush.msra.mxu0 %v123
  %167 = vmatpush.msra.mxu0 %v121
  %168 = vmatpush.msra.mxu0 %v119
  %169 = vmatpush.msra.mxu0 %v117
  %170 = vmatpush.msra.mxu0 %v115
  %171 = vmatpush.msra.mxu0 %v113
  %172 = vmatmul.f32.gmra.mxu0 %v134
  %v173 = vpop.f32.mrf.mxu0
  %v174 = vadd.f32 0.0, %v173
  %175 = vdwg.mxu0
  %v176 = vadd.f32 %v84, %v154
  %v177 = vxor.u32 %v176, 2147483648
  %v178 = vmul.f32 %v177, 1.442695
  %v179 = vpow.pop %v178
  %v180 = vadd.f32 %v179, 1.0
  %v181 = vrcp.pop %v180
  %v182 = vmul.f32 %v180, %v181
  %v183 = vsub.f32 1.0, %v182
  %v184 = vmul.f32 %v181, %v183
  %v185 = vadd.f32 %v181, %v184
  %vm186 = vweird.f32 %v180
  %vm187 = vweird.f32 %v181
  %vm188 = vmor %vm186, %vm187
  %v189 = vsel %vm188, %v181, %v185
  %v190 = vand.u32 2147483647, %v180
  %vm191 = vcmp.eq.f32.partialorder %v190, 8.507059e+37
  %v192 = vand.u32 %v180, 2147483648
  %v193 = vor.u32 1.1754944e-38, %v192
  %v194 = vsel %vm191, %v193, %v189
  %v195 = vmul.f32 1.0, %v194
  %v196 = vadd.f32 %v174, %v130
  %v197 = vmul.f32 %v195, %v196
  %v198 = vadd.f32 %v107, %v197
  %v199 = vtanh.pop %v198
  %v200 = vsub.f32 1.0, %v195
  %202 = vrot.lane.b32.xlu0 %v199, 64
  %v203 = vpop.permute.xlu0 %202
  %v205 = vmul.f32 %v200, %v203
  %v206 = vmul.f32 %v195, 0.0
  %v207 = vadd.f32 %v205, %v206
  %209 = vrot.lane.b32.xlu0 %v207, 64
  %v210 = vpop.permute.xlu0 %209
  %vm212 = vcmask 517120
  %213 = vst.msk [vmem:[#allocation2] sm:$0x3] %vm212, %v210
  %v214 = vsel %vm132, %v210, 0
  %216 = vmatpush.msra.mxu0 0.0
  %217 = vmatpush.msra.mxu0 0.0
  %218 = vmatpush.msra.mxu0 0.0
  %219 = vmatpush.msra.mxu0 0.0
  %220 = vmatpush.msra.mxu0 0.0
  %221 = vmatpush.msra.mxu0 0.0
  %222 = vmatpush.msra.mxu0 0.0
  %223 = vmatpush.msra.mxu0 0.0
  %224 = vmatpush.msra.mxu0 %v126
  %225 = vmatpush.msra.mxu0 %v124
  %226 = vmatpush.msra.mxu0 %v122
  %227 = vmatpush.msra.mxu0 %v120
  %228 = vmatpush.msra.mxu0 %v118
  %229 = vmatpush.msra.mxu0 %v116
  %230 = vmatpush.msra.mxu0 %v114
  %231 = vmatpush.msra.mxu0 %v112
  %232 = vmatmul.f32.gmra.mxu0 %v214
  %v233 = vpop.f32.mrf.mxu0
  %v234 = vadd.f32 0.0, %v233
  %235 = vdwg.mxu0
  %236 = vmatpush.msra.mxu0 0.0
  %237 = vmatpush.msra.mxu0 0.0
  %238 = vmatpush.msra.mxu0 0.0
  %239 = vmatpush.msra.mxu0 0.0
  %240 = vmatpush.msra.mxu0 0.0
  %241 = vmatpush.msra.mxu0 0.0
  %242 = vmatpush.msra.mxu0 0.0
  %243 = vmatpush.msra.mxu0 0.0
  %244 = vmatpush.msra.mxu0 %v127
  %245 = vmatpush.msra.mxu0 %v125
  %246 = vmatpush.msra.mxu0 %v123
  %247 = vmatpush.msra.mxu0 %v121
  %248 = vmatpush.msra.mxu0 %v119
  %249 = vmatpush.msra.mxu0 %v117
  %250 = vmatpush.msra.mxu0 %v115
  %251 = vmatpush.msra.mxu0 %v113
  %252 = vmatmul.f32.gmra.mxu0 %v214
  %v253 = vpop.f32.mrf.mxu0
  %v254 = vadd.f32 0.0, %v253
  %255 = vdwg.mxu0
  %v257 = vrot.slane %v234, 6
  %v259 = vadd.f32 %v84, %v257
  %v260 = vxor.u32 %v259, 2147483648
  %v261 = vmul.f32 %v260, 1.442695
  %v262 = vpow.pop %v261
  %v263 = vadd.f32 %v262, 1.0
  %v264 = vrcp.pop %v263
  %v265 = vmul.f32 %v263, %v264
  %v266 = vsub.f32 1.0, %v265
  %v267 = vmul.f32 %v264, %v266
  %v268 = vadd.f32 %v264, %v267
  %vm269 = vweird.f32 %v263
  %vm270 = vweird.f32 %v264
  %vm271 = vmor %vm269, %vm270
  %v272 = vsel %vm271, %v264, %v268
  %v273 = vand.u32 2147483647, %v263
  %vm274 = vcmp.eq.f32.partialorder %v273, 8.507059e+37
  %v275 = vand.u32 %v263, 2147483648
  %v276 = vor.u32 1.1754944e-38, %v275
  %v277 = vsel %vm274, %v276, %v272
  %v278 = vmul.f32 1.0, %v277
  %v279 = vadd.f32 %v254, %v130
  %v281 = vrot.slane %v279, 6
  %v283 = vmul.f32 %v278, %v281
  %v284 = vadd.f32 %v107, %v283
  %v285 = vtanh.pop %v284
  %v286 = vsub.f32 1.0, %v278
  %288 = vrot.lane.b32.xlu0 %v285, 64
  %v289 = vpop.permute.xlu0 %288
  %v291 = vmul.f32 %v286, %v289
  %v292 = vrot.slane %v207, 6
  %v294 = vmul.f32 %v278, %v292
  %v295 = vadd.f32 %v291, %v294
  %297 = vrot.lane.b32.xlu0 %v295, 64
  %v298 = vpop.permute.xlu0 %297
  %vm300 = vcmask 519170
  %301 = vst.msk [vmem:[#allocation2] sm:$0xc] %vm300, %v298
  %v302 = vrot.slane %v295, 2
  %303 = vrot.lane.b32.xlu0 %v302, 64
  %v304 = vpop.permute.xlu0 %303
  %v305 = vsel %vm132, %v304, 0
  %307 = vmatpush.msra.mxu0 0.0
  %308 = vmatpush.msra.mxu0 0.0
  %309 = vmatpush.msra.mxu0 0.0
  %310 = vmatpush.msra.mxu0 0.0
  %311 = vmatpush.msra.mxu0 0.0
  %312 = vmatpush.msra.mxu0 0.0
  %313 = vmatpush.msra.mxu0 0.0
  %314 = vmatpush.msra.mxu0 0.0
  %315 = vmatpush.msra.mxu0 %v126
  %316 = vmatpush.msra.mxu0 %v124
  %317 = vmatpush.msra.mxu0 %v122
  %318 = vmatpush.msra.mxu0 %v120
  %319 = vmatpush.msra.mxu0 %v118
  %320 = vmatpush.msra.mxu0 %v116
  %321 = vmatpush.msra.mxu0 %v114
  %322 = vmatpush.msra.mxu0 %v112
  %323 = vmatmul.f32.gmra.mxu0 %v305
  %v324 = vpop.f32.mrf.mxu0
  %v325 = vadd.f32 0.0, %v324
  %326 = vdwg.mxu0
  %327 = vmatpush.msra.mxu0 0.0
  %328 = vmatpush.msra.mxu0 0.0
  %329 = vmatpush.msra.mxu0 0.0
  %330 = vmatpush.msra.mxu0 0.0
  %331 = vmatpush.msra.mxu0 0.0
  %332 = vmatpush.msra.mxu0 0.0
  %333 = vmatpush.msra.mxu0 0.0
  %334 = vmatpush.msra.mxu0 0.0
  %335 = vmatpush.msra.mxu0 %v127
  %336 = vmatpush.msra.mxu0 %v125
  %337 = vmatpush.msra.mxu0 %v123
  %338 = vmatpush.msra.mxu0 %v121
  %339 = vmatpush.msra.mxu0 %v119
  %340 = vmatpush.msra.mxu0 %v117
  %341 = vmatpush.msra.mxu0 %v115
  %342 = vmatpush.msra.mxu0 %v113
  %343 = vmatmul.f32.gmra.mxu0 %v305
  %v344 = vpop.f32.mrf.mxu0
  %v345 = vadd.f32 0.0, %v344
  %346 = vdwg.mxu0
  %v348 = vrot.slane %v325, 4
  %v350 = vadd.f32 %v84, %v348
  %v351 = vxor.u32 %v350, 2147483648
  %v352 = vmul.f32 %v351, 1.442695
  %v353 = vpow.pop %v352
  %v354 = vadd.f32 %v353, 1.0
  %v355 = vrcp.pop %v354
  %v356 = vmul.f32 %v354, %v355
  %v357 = vsub.f32 1.0, %v356
  %v358 = vmul.f32 %v355, %v357
  %v359 = vadd.f32 %v355, %v358
  %vm360 = vweird.f32 %v354
  %vm361 = vweird.f32 %v355
  %vm362 = vmor %vm360, %vm361
  %v363 = vsel %vm362, %v355, %v359
  %v364 = vand.u32 2147483647, %v354
  %vm365 = vcmp.eq.f32.partialorder %v364, 8.507059e+37
  %v366 = vand.u32 %v354, 2147483648
  %v367 = vor.u32 1.1754944e-38, %v366
  %v368 = vsel %vm365, %v367, %v363
  %v369 = vmul.f32 1.0, %v368
  %v370 = vadd.f32 %v345, %v130
  %v372 = vrot.slane %v370, 4
  %v374 = vmul.f32 %v369, %v372
  %v375 = vadd.f32 %v107, %v374
  %v376 = vtanh.pop %v375
  %v377 = vsub.f32 1.0, %v369
  %379 = vrot.lane.b32.xlu0 %v376, 64
  %v380 = vpop.permute.xlu0 %379
  %v382 = vmul.f32 %v377, %v380
  %v383 = vrot.slane %v295, 6
  %v385 = vmul.f32 %v369, %v383
  %v386 = vadd.f32 %v382, %v385
  %388 = vrot.lane.b32.xlu0 %v386, 64
  %v389 = vpop.permute.xlu0 %388
  %vm391 = vcmask 521220
  %392 = vst.msk [vmem:[#allocation2] sm:$0x30] %vm391, %v389
  %v393 = vrot.slane %v386, 4
  %394 = vrot.lane.b32.xlu0 %v393, 64
  %v395 = vpop.permute.xlu0 %394
  %v396 = vsel %vm132, %v395, 0
  %398 = vmatpush.msra.mxu0 0.0
  %399 = vmatpush.msra.mxu0 0.0
  %400 = vmatpush.msra.mxu0 0.0
  %401 = vmatpush.msra.mxu0 0.0
  %402 = vmatpush.msra.mxu0 0.0
  %403 = vmatpush.msra.mxu0 0.0
  %404 = vmatpush.msra.mxu0 0.0
  %405 = vmatpush.msra.mxu0 0.0
  %406 = vmatpush.msra.mxu0 %v126
  %407 = vmatpush.msra.mxu0 %v124
  %408 = vmatpush.msra.mxu0 %v122
  %409 = vmatpush.msra.mxu0 %v120
  %410 = vmatpush.msra.mxu0 %v118
  %411 = vmatpush.msra.mxu0 %v116
  %412 = vmatpush.msra.mxu0 %v114
  %413 = vmatpush.msra.mxu0 %v112
  %414 = vmatmul.f32.gmra.mxu0 %v396
  %v415 = vpop.f32.mrf.mxu0
  %v416 = vadd.f32 0.0, %v415
  %417 = vdwg.mxu0
  %418 = vmatpush.msra.mxu0 0.0
  %419 = vmatpush.msra.mxu0 0.0
  %420 = vmatpush.msra.mxu0 0.0
  %421 = vmatpush.msra.mxu0 0.0
  %422 = vmatpush.msra.mxu0 0.0
  %423 = vmatpush.msra.mxu0 0.0
  %424 = vmatpush.msra.mxu0 0.0
  %425 = vmatpush.msra.mxu0 0.0
  %426 = vmatpush.msra.mxu0 %v127
  %427 = vmatpush.msra.mxu0 %v125
  %428 = vmatpush.msra.mxu0 %v123
  %429 = vmatpush.msra.mxu0 %v121
  %430 = vmatpush.msra.mxu0 %v119
  %431 = vmatpush.msra.mxu0 %v117
  %432 = vmatpush.msra.mxu0 %v115
  %433 = vmatpush.msra.mxu0 %v113
  %434 = vmatmul.f32.gmra.mxu0 %v396
  %v435 = vpop.f32.mrf.mxu0
  %v436 = vadd.f32 0.0, %v435
  %437 = vdwg.mxu0
  %v439 = vrot.slane %v416, 2
  %v441 = vadd.f32 %v84, %v439
  %v442 = vxor.u32 %v441, 2147483648
  %v443 = vmul.f32 %v442, 1.442695
  %v444 = vpow.pop %v443
  %v445 = vadd.f32 %v444, 1.0
  %v446 = vrcp.pop %v445
  %v447 = vmul.f32 %v445, %v446
  %v448 = vsub.f32 1.0, %v447
  %v449 = vmul.f32 %v446, %v448
  %v450 = vadd.f32 %v446, %v449
  %vm451 = vweird.f32 %v445
  %vm452 = vweird.f32 %v446
  %vm453 = vmor %vm451, %vm452
  %v454 = vsel %vm453, %v446, %v450
  %v455 = vand.u32 2147483647, %v445
  %vm456 = vcmp.eq.f32.partialorder %v455, 8.507059e+37
  %v457 = vand.u32 %v445, 2147483648
  %v458 = vor.u32 1.1754944e-38, %v457
  %v459 = vsel %vm456, %v458, %v454
  %v460 = vmul.f32 1.0, %v459
  %v461 = vadd.f32 %v436, %v130
  %v463 = vrot.slane %v461, 2
  %v465 = vmul.f32 %v460, %v463
  %v466 = vadd.f32 %v107, %v465
  %v467 = vtanh.pop %v466
  %v468 = vsub.f32 1.0, %v460
  %470 = vrot.lane.b32.xlu0 %v467, 64
  %v471 = vpop.permute.xlu0 %470
  %v473 = vmul.f32 %v468, %v471
  %v474 = vrot.slane %v386, 6
  %v476 = vmul.f32 %v460, %v474
  %v477 = vadd.f32 %v473, %v476
  %479 = vrot.lane.b32.xlu0 %v477, 64
  %v480 = vpop.permute.xlu0 %479
  %vm482 = vcmask 523270
  %483 = vst.msk [vmem:[#allocation2] sm:$0xc0] %vm482, %v480
  %v484 = vrot.slane %v477, 6
  %485 = vrot.lane.b32.xlu0 %v484, 64
  %v486 = vpop.permute.xlu0 %485
  %v487 = vsel %vm132, %v486, 0
  %489 = vmatpush.msra.mxu0 0.0
  %490 = vmatpush.msra.mxu0 0.0
  %491 = vmatpush.msra.mxu0 0.0
  %492 = vmatpush.msra.mxu0 0.0
  %493 = vmatpush.msra.mxu0 0.0
  %494 = vmatpush.msra.mxu0 0.0
  %495 = vmatpush.msra.mxu0 0.0
  %496 = vmatpush.msra.mxu0 0.0
  %497 = vmatpush.msra.mxu0 %v126
  %498 = vmatpush.msra.mxu0 %v124
  %499 = vmatpush.msra.mxu0 %v122
  %500 = vmatpush.msra.mxu0 %v120
  %501 = vmatpush.msra.mxu0 %v118
  %502 = vmatpush.msra.mxu0 %v116
  %503 = vmatpush.msra.mxu0 %v114
  %504 = vmatpush.msra.mxu0 %v112
  %505 = vmatmul.f32.gmra.mxu0 %v487
  %v506 = vpop.f32.mrf.mxu0
  %v507 = vadd.f32 0.0, %v506
  %508 = vdwg.mxu0
  %509 = vmatpush.msra.mxu0 0.0
  %510 = vmatpush.msra.mxu0 0.0
  %511 = vmatpush.msra.mxu0 0.0
  %512 = vmatpush.msra.mxu0 0.0
  %513 = vmatpush.msra.mxu0 0.0
  %514 = vmatpush.msra.mxu0 0.0
  %515 = vmatpush.msra.mxu0 0.0
  %516 = vmatpush.msra.mxu0 0.0
  %517 = vmatpush.msra.mxu0 %v127
  %518 = vmatpush.msra.mxu0 %v125
  %519 = vmatpush.msra.mxu0 %v123
  %520 = vmatpush.msra.mxu0 %v121
  %521 = vmatpush.msra.mxu0 %v119
  %522 = vmatpush.msra.mxu0 %v117
  %523 = vmatpush.msra.mxu0 %v115
  %524 = vmatpush.msra.mxu0 %v113
  %525 = vmatmul.f32.gmra.mxu0 %v487
  %v526 = vpop.f32.mrf.mxu0
  %v527 = vadd.f32 0.0, %v526
  %528 = vdwg.mxu0
  %v529 = vadd.f32 %v87, %v507
  %v530 = vxor.u32 %v529, 2147483648
  %v531 = vmul.f32 %v530, 1.442695
  %v532 = vpow.pop %v531
  %v533 = vadd.f32 %v532, 1.0
  %v534 = vrcp.pop %v533
  %v535 = vmul.f32 %v533, %v534
  %v536 = vsub.f32 1.0, %v535
  %v537 = vmul.f32 %v534, %v536
  %v538 = vadd.f32 %v534, %v537
  %vm539 = vweird.f32 %v533
  %vm540 = vweird.f32 %v534
  %vm541 = vmor %vm539, %vm540
  %v542 = vsel %vm541, %v534, %v538
  %v543 = vand.u32 2147483647, %v533
  %vm544 = vcmp.eq.f32.partialorder %v543, 8.507059e+37
  %v545 = vand.u32 %v533, 2147483648
  %v546 = vor.u32 1.1754944e-38, %v545
  %v547 = vsel %vm544, %v546, %v542
  %v548 = vmul.f32 1.0, %v547
  %v549 = vadd.f32 %v527, %v130
  %v550 = vmul.f32 %v548, %v549
  %v551 = vadd.f32 %v110, %v550
  %v552 = vtanh.pop %v551
  %v553 = vsub.f32 1.0, %v548
  %555 = vrot.lane.b32.xlu0 %v552, 64
  %v556 = vpop.permute.xlu0 %555
  %v558 = vmul.f32 %v553, %v556
  %v560 = vmul.f32 %v548, %v484
  %v561 = vadd.f32 %v558, %v560
  %563 = vrot.lane.b32.xlu0 %v561, 64
  %v564 = vpop.permute.xlu0 %563
  %566 = vst.msk [vmem:[#allocation2 + $0x8] sm:$0x3] %vm212, %v564
  %v567 = vsel %vm132, %v564, 0
  %569 = vmatpush.msra.mxu0 0.0
  %570 = vmatpush.msra.mxu0 0.0
  %571 = vmatpush.msra.mxu0 0.0
  %572 = vmatpush.msra.mxu0 0.0
  %573 = vmatpush.msra.mxu0 0.0
  %574 = vmatpush.msra.mxu0 0.0
  %575 = vmatpush.msra.mxu0 0.0
  %576 = vmatpush.msra.mxu0 0.0
  %577 = vmatpush.msra.mxu0 %v126
  %578 = vmatpush.msra.mxu0 %v124
  %579 = vmatpush.msra.mxu0 %v122
  %580 = vmatpush.msra.mxu0 %v120
  %581 = vmatpush.msra.mxu0 %v118
  %582 = vmatpush.msra.mxu0 %v116
  %583 = vmatpush.msra.mxu0 %v114
  %584 = vmatpush.msra.mxu0 %v112
  %585 = vmatmul.f32.gmra.mxu0 %v567
  %v586 = vpop.f32.mrf.mxu0
  %v587 = vadd.f32 0.0, %v586
  %588 = vdwg.mxu0
  %589 = vmatpush.msra.mxu0 0.0
  %590 = vmatpush.msra.mxu0 0.0
  %591 = vmatpush.msra.mxu0 0.0
  %592 = vmatpush.msra.mxu0 0.0
  %593 = vmatpush.msra.mxu0 0.0
  %594 = vmatpush.msra.mxu0 0.0
  %595 = vmatpush.msra.mxu0 0.0
  %596 = vmatpush.msra.mxu0 0.0
  %597 = vmatpush.msra.mxu0 %v127
  %598 = vmatpush.msra.mxu0 %v125
  %599 = vmatpush.msra.mxu0 %v123
  %600 = vmatpush.msra.mxu0 %v121
  %601 = vmatpush.msra.mxu0 %v119
  %602 = vmatpush.msra.mxu0 %v117
  %603 = vmatpush.msra.mxu0 %v115
  %604 = vmatpush.msra.mxu0 %v113
  %605 = vmatmul.f32.gmra.mxu0 %v567
  %v606 = vpop.f32.mrf.mxu0
  %v607 = vadd.f32 0.0, %v606
  %608 = vdwg.mxu0
  %v610 = vrot.slane %v587, 6
  %v612 = vadd.f32 %v87, %v610
  %v613 = vxor.u32 %v612, 2147483648
  %v614 = vmul.f32 %v613, 1.442695
  %v615 = vpow.pop %v614
  %v616 = vadd.f32 %v615, 1.0
  %v617 = vrcp.pop %v616
  %v618 = vmul.f32 %v616, %v617
  %v619 = vsub.f32 1.0, %v618
  %v620 = vmul.f32 %v617, %v619
  %v621 = vadd.f32 %v617, %v620
  %vm622 = vweird.f32 %v616
  %vm623 = vweird.f32 %v617
  %vm624 = vmor %vm622, %vm623
  %v625 = vsel %vm624, %v617, %v621
  %v626 = vand.u32 2147483647, %v616
  %vm627 = vcmp.eq.f32.partialorder %v626, 8.507059e+37
  %v628 = vand.u32 %v616, 2147483648
  %v629 = vor.u32 1.1754944e-38, %v628
  %v630 = vsel %vm627, %v629, %v625
  %v631 = vmul.f32 1.0, %v630
  %v632 = vadd.f32 %v607, %v130
  %v634 = vrot.slane %v632, 6
  %v636 = vmul.f32 %v631, %v634
  %v637 = vadd.f32 %v110, %v636
  %v638 = vtanh.pop %v637
  %v639 = vsub.f32 1.0, %v631
  %641 = vrot.lane.b32.xlu0 %v638, 64
  %v642 = vpop.permute.xlu0 %641
  %v644 = vmul.f32 %v639, %v642
  %v645 = vrot.slane %v561, 6
  %v647 = vmul.f32 %v631, %v645
  %v648 = vadd.f32 %v644, %v647
  %650 = vrot.lane.b32.xlu0 %v648, 64
  %v651 = vpop.permute.xlu0 %650
  %653 = vst.msk [vmem:[#allocation2 + $0x8] sm:$0xc] %vm300, %v651
  %v654 = vrot.slane %v648, 2
  %655 = vrot.lane.b32.xlu0 %v654, 64
  %v656 = vpop.permute.xlu0 %655
  %v657 = vsel %vm132, %v656, 0
  %659 = vmatpush.msra.mxu0 0.0
  %660 = vmatpush.msra.mxu0 0.0
  %661 = vmatpush.msra.mxu0 0.0
  %662 = vmatpush.msra.mxu0 0.0
  %663 = vmatpush.msra.mxu0 0.0
  %664 = vmatpush.msra.mxu0 0.0
  %665 = vmatpush.msra.mxu0 0.0
  %666 = vmatpush.msra.mxu0 0.0
  %667 = vmatpush.msra.mxu0 %v126
  %668 = vmatpush.msra.mxu0 %v124
  %669 = vmatpush.msra.mxu0 %v122
  %670 = vmatpush.msra.mxu0 %v120
  %671 = vmatpush.msra.mxu0 %v118
  %672 = vmatpush.msra.mxu0 %v116
  %673 = vmatpush.msra.mxu0 %v114
  %674 = vmatpush.msra.mxu0 %v112
  %675 = vmatmul.f32.gmra.mxu0 %v657
  %v676 = vpop.f32.mrf.mxu0
  %v677 = vadd.f32 0.0, %v676
  %678 = vdwg.mxu0
  %679 = vmatpush.msra.mxu0 0.0
  %680 = vmatpush.msra.mxu0 0.0
  %681 = vmatpush.msra.mxu0 0.0
  %682 = vmatpush.msra.mxu0 0.0
  %683 = vmatpush.msra.mxu0 0.0
  %684 = vmatpush.msra.mxu0 0.0
  %685 = vmatpush.msra.mxu0 0.0
  %686 = vmatpush.msra.mxu0 0.0
  %687 = vmatpush.msra.mxu0 %v127
  %688 = vmatpush.msra.mxu0 %v125
  %689 = vmatpush.msra.mxu0 %v123
  %690 = vmatpush.msra.mxu0 %v121
  %691 = vmatpush.msra.mxu0 %v119
  %692 = vmatpush.msra.mxu0 %v117
  %693 = vmatpush.msra.mxu0 %v115
  %694 = vmatpush.msra.mxu0 %v113
  %695 = vmatmul.f32.gmra.mxu0 %v657
  %v696 = vpop.f32.mrf.mxu0
  %v697 = vadd.f32 0.0, %v696
  %698 = vdwg.mxu0
  %v700 = vrot.slane %v677, 4
  %v702 = vadd.f32 %v87, %v700
  %v703 = vxor.u32 %v702, 2147483648
  %v704 = vmul.f32 %v703, 1.442695
  %v705 = vpow.pop %v704
  %v706 = vadd.f32 %v705, 1.0
  %v707 = vrcp.pop %v706
  %v708 = vmul.f32 %v706, %v707
  %v709 = vsub.f32 1.0, %v708
  %v710 = vmul.f32 %v707, %v709
  %v711 = vadd.f32 %v707, %v710
  %vm712 = vweird.f32 %v706
  %vm713 = vweird.f32 %v707
  %vm714 = vmor %vm712, %vm713
  %v715 = vsel %vm714, %v707, %v711
  %v716 = vand.u32 2147483647, %v706
  %vm717 = vcmp.eq.f32.partialorder %v716, 8.507059e+37
  %v718 = vand.u32 %v706, 2147483648
  %v719 = vor.u32 1.1754944e-38, %v718
  %v720 = vsel %vm717, %v719, %v715
  %v721 = vmul.f32 1.0, %v720
  %v722 = vadd.f32 %v697, %v130
  %v724 = vrot.slane %v722, 4
  %v726 = vmul.f32 %v721, %v724
  %v727 = vadd.f32 %v110, %v726
  %v728 = vtanh.pop %v727
  %v729 = vsub.f32 1.0, %v721
  %731 = vrot.lane.b32.xlu0 %v728, 64
  %v732 = vpop.permute.xlu0 %731
  %v734 = vmul.f32 %v729, %v732
  %v735 = vrot.slane %v648, 6
  %v737 = vmul.f32 %v721, %v735
  %v738 = vadd.f32 %v734, %v737
  %740 = vrot.lane.b32.xlu0 %v738, 64
  %v741 = vpop.permute.xlu0 %740
  %743 = vst.msk [vmem:[#allocation2 + $0x8] sm:$0x30] %vm391, %v741
  %v744 = vrot.slane %v738, 4
  %745 = vrot.lane.b32.xlu0 %v744, 64
  %v746 = vpop.permute.xlu0 %745
  %v747 = vsel %vm132, %v746, 0
  %749 = vmatpush.msra.mxu0 0.0
  %750 = vmatpush.msra.mxu0 0.0
  %751 = vmatpush.msra.mxu0 0.0
  %752 = vmatpush.msra.mxu0 0.0
  %753 = vmatpush.msra.mxu0 0.0
  %754 = vmatpush.msra.mxu0 0.0
  %755 = vmatpush.msra.mxu0 0.0
  %756 = vmatpush.msra.mxu0 0.0
  %757 = vmatpush.msra.mxu0 %v126
  %758 = vmatpush.msra.mxu0 %v124
  %759 = vmatpush.msra.mxu0 %v122
  %760 = vmatpush.msra.mxu0 %v120
  %761 = vmatpush.msra.mxu0 %v118
  %762 = vmatpush.msra.mxu0 %v116
  %763 = vmatpush.msra.mxu0 %v114
  %764 = vmatpush.msra.mxu0 %v112
  %765 = vmatmul.f32.gmra.mxu0 %v747
  %v766 = vpop.f32.mrf.mxu0
  %v767 = vadd.f32 0.0, %v766
  %768 = vdwg.mxu0
  %769 = vmatpush.msra.mxu0 0.0
  %770 = vmatpush.msra.mxu0 0.0
  %771 = vmatpush.msra.mxu0 0.0
  %772 = vmatpush.msra.mxu0 0.0
  %773 = vmatpush.msra.mxu0 0.0
  %774 = vmatpush.msra.mxu0 0.0
  %775 = vmatpush.msra.mxu0 0.0
  %776 = vmatpush.msra.mxu0 0.0
  %777 = vmatpush.msra.mxu0 %v127
  %778 = vmatpush.msra.mxu0 %v125
  %779 = vmatpush.msra.mxu0 %v123
  %780 = vmatpush.msra.mxu0 %v121
  %781 = vmatpush.msra.mxu0 %v119
  %782 = vmatpush.msra.mxu0 %v117
  %783 = vmatpush.msra.mxu0 %v115
  %784 = vmatpush.msra.mxu0 %v113
  %785 = vmatmul.f32.gmra.mxu0 %v747
  %v786 = vpop.f32.mrf.mxu0
  %v787 = vadd.f32 0.0, %v786
  %788 = vdwg.mxu0
  %v790 = vrot.slane %v767, 2
  %v792 = vadd.f32 %v87, %v790
  %v793 = vxor.u32 %v792, 2147483648
  %v794 = vmul.f32 %v793, 1.442695
  %v795 = vpow.pop %v794
  %v796 = vadd.f32 %v795, 1.0
  %v797 = vrcp.pop %v796
  %v798 = vmul.f32 %v796, %v797
  %v799 = vsub.f32 1.0, %v798
  %v800 = vmul.f32 %v797, %v799
  %v801 = vadd.f32 %v797, %v800
  %vm802 = vweird.f32 %v796
  %vm803 = vweird.f32 %v797
  %vm804 = vmor %vm802, %vm803
  %v805 = vsel %vm804, %v797, %v801
  %v806 = vand.u32 2147483647, %v796
  %vm807 = vcmp.eq.f32.partialorder %v806, 8.507059e+37
  %v808 = vand.u32 %v796, 2147483648
  %v809 = vor.u32 1.1754944e-38, %v808
  %v810 = vsel %vm807, %v809, %v805
  %v811 = vmul.f32 1.0, %v810
  %v812 = vadd.f32 %v787, %v130
  %v814 = vrot.slane %v812, 2
  %v816 = vmul.f32 %v811, %v814
  %v817 = vadd.f32 %v110, %v816
  %v818 = vtanh.pop %v817
  %v819 = vsub.f32 1.0, %v811
  %821 = vrot.lane.b32.xlu0 %v818, 64
  %v822 = vpop.permute.xlu0 %821
  %v824 = vmul.f32 %v819, %v822
  %v825 = vrot.slane %v738, 6
  %v827 = vmul.f32 %v811, %v825
  %v828 = vadd.f32 %v824, %v827
  %830 = vrot.lane.b32.xlu0 %v828, 64
  %v831 = vpop.permute.xlu0 %830
  %833 = vst.msk [vmem:[#allocation2 + $0x8] sm:$0xc0] %vm482, %v831
  %v834 = vld [vmem:[#allocation2] sm:$0xff]
  %v835 = vld [vmem:[#allocation2 + $0x8] sm:$0xff]
  %v836 = vld [vmem:[%s5] sm:$0xff]
  %v837 = vld [vmem:[%s5 + $0x8] sm:$0xff]
  %v838 = vld [vmem:[%s5 + $0x10] sm:$0xff]
  %v839 = vld [vmem:[%s5 + $0x18] sm:$0xff]
  %v840 = vld [vmem:[%s5 + $0x20] sm:$0xff]
  %v841 = vld [vmem:[%s5 + $0x28] sm:$0xff]
  %v842 = vld [vmem:[%s5 + $0x30] sm:$0xff]
  %v843 = vld [vmem:[%s5 + $0x38] sm:$0xff]
  %v844 = vld [vmem:[%s6] sm:$0x1]
  %v846 = vperm.slane %v844, 0
  %v849 = vsel %vm132, %v834, 0
  %v852 = vsel %vm132, %v835, 0
  %854 = vmatpush.msra.mxu0 0.0
  %855 = vmatpush.msra.mxu0 0.0
  %856 = vmatpush.msra.mxu0 0.0
  %857 = vmatpush.msra.mxu0 0.0
  %858 = vmatpush.msra.mxu0 0.0
  %859 = vmatpush.msra.mxu0 0.0
  %860 = vmatpush.msra.mxu0 0.0
  %861 = vmatpush.msra.mxu0 0.0
  %862 = vmatpush.msra.mxu0 %v843
  %863 = vmatpush.msra.mxu0 %v842
  %864 = vmatpush.msra.mxu0 %v841
  %865 = vmatpush.msra.mxu0 %v840
  %866 = vmatpush.msra.mxu0 %v839
  %867 = vmatpush.msra.mxu0 %v838
  %868 = vmatpush.msra.mxu0 %v837
  %869 = vmatpush.msra.mxu0 %v836
  %870 = vmatmul.f32.gmra.mxu0 %v849
  %v871 = vpop.f32.mrf.mxu0
  %v872 = vadd.f32 %v846, %v871
  %873 = vmatmul.f32.gmra.mxu0 %v852
  %v874 = vpop.f32.mrf.mxu0
  %v875 = vadd.f32 %v846, %v874
  %876 = vdwg.mxu0
  %v877 = vmax.f32 %v872, 0.0
  %v878 = vmax.f32 %v875, 0.0
  %vm879 = vcmask 64512
  %880 = vst.msk [vmem:[%s7] sm:$0xff] %vm879, %v877
  %881 = vst.msk [vmem:[%s7 + $0x8] sm:$0xff] %vm879, %v878
  // Predicated region
  $region30: #{tpu_custom_call.1} parent=0 // pred_check
    _
  $region31: #{tpu_custom_call.1} parent=0 // pred_check_branch
    %883 = sbr.rel (0) target = $region33
  $region32: #{tpu_custom_call.1} parent=0 // pred_region
    _
  $region33: #{tpu_custom_call.1} parent=0 // pred_fallthru
    _
  // Predicated region
  $region34: #{tpu_custom_call.1} parent=0 // pred_check
    _
  $region35: #{tpu_custom_call.1} parent=0 // pred_check_branch
    %885 = sbr.rel (0) target = $region37
  $region36: #{tpu_custom_call.1} parent=0 // pred_region
    _
  $region37: #{tpu_custom_call.1} parent=0 // pred_fallthru
    _

</llo_original>
